<compile_context>
chip_gen: v7x
topology: tpu7x:2x2x1
jax: 0.10.0
libtpu: 0.0.40
codegen_flags: <defaults>
</compile_context>

<pallas_src>
import jax
import jax.numpy as jnp
from jax.experimental import pallas as pl
from jax.experimental.pallas import tpu as pltpu


def _round_up(x, m):
    return ((x + m - 1) // m) * m


# --------------------------------------------------------------------------
# Kernels
# --------------------------------------------------------------------------
def _cc_kernel_packed(v_ref, e_ref, we_ref, wv_ref, bias_ref, v_out_ref, e_out_ref):
    """Lane-dense path: p = 128//dim batch rows packed per 128-lane row.

    we_ref : (128, 256) = [W_vv | W_ve], W_xy[a, c] = w_xy_tiled[a] * blockdiag[a, c]
    wv_ref : (128, 256) = [W_ev | W_ee]
    Two matmuls compute all four segmented per-row dot products, already
    broadcast back across each dim-wide lane segment (MXU slot).
    """
    v = v_ref[...].astype(jnp.float32)            # (tb, 128)
    e = e_ref[...].astype(jnp.float32)            # (tb, 128)
    se = jnp.dot(e, we_ref[...], preferred_element_type=jnp.float32)   # (tb, 256)
    sv = jnp.dot(v, wv_ref[...], preferred_element_type=jnp.float32)   # (tb, 256)
    s_e_vv, s_e_ve = se[:, :128], se[:, 128:]
    s_v_ev, s_v_ee = sv[:, :128], sv[:, 128:]
    bias = bias_ref[...]                          # (8, 128) f32
    b_v, b_e = bias[0:1], bias[1:2]
    v_out_ref[...] = (v * s_e_vv + e * s_v_ev + b_v).astype(v_out_ref.dtype)
    e_out_ref[...] = (v * s_e_ve + e * s_v_ee + b_e).astype(e_out_ref.dtype)


def _cc_kernel_plain(v_ref, e_ref, par_ref, v_out_ref, e_out_ref):
    """General path: one batch row per sublane row, lane dim padded to k*128."""
    v = v_ref[...].astype(jnp.float32)            # (tb, L)
    e = e_ref[...].astype(jnp.float32)            # (tb, L)
    par = par_ref[...]                            # (8, L) f32 param slab
    w_vv, w_ev, w_ve, w_ee = par[0:1], par[1:2], par[2:3], par[3:4]
    b_v, b_e = par[4:5], par[5:6]

    s_e_vv = jnp.sum(e * w_vv, axis=-1, keepdims=True)   # (tb, 1)
    s_e_ve = jnp.sum(e * w_ve, axis=-1, keepdims=True)
    s_v_ev = jnp.sum(v * w_ev, axis=-1, keepdims=True)
    s_v_ee = jnp.sum(v * w_ee, axis=-1, keepdims=True)

    v_out_ref[...] = (v * s_e_vv + e * s_v_ev + b_v).astype(v_out_ref.dtype)
    e_out_ref[...] = (v * s_e_ve + e * s_v_ee + b_e).astype(e_out_ref.dtype)


# --------------------------------------------------------------------------
# Tiling / VMEM accounting
# --------------------------------------------------------------------------
_PIPELINE_BUDGET = 12 * 1024 * 1024   # (2 in + 2 out) x 2 buffers of DMA'd tiles
_TEMP_HEADROOM = 12 * 1024 * 1024     # in-kernel f32 temporaries
_VMEM_CEIL = 32 * 1024 * 1024         # <= default scoped on v6e/v7x, < physical everywhere


def _pick_tile(rows, lane_width, itemsize, budget=_PIPELINE_BUDGET):
    """Largest sublane-aligned (multiple-of-8) batch tile whose double-buffered
    pipeline footprint (2 in + 2 out arrays, x2 buffers, actual itemsize) fits
    `budget`, while forcing >= 2 grid steps whenever there is more than one
    sublane-tile of rows (so v7x's two TensorCores both get work)."""
    per_row = 8 * lane_width * itemsize            # 4 arrays x 2 buffers per row
    cap = max(8, (budget // per_row) // 8 * 8)
    rows8 = _round_up(rows, 8)
    if rows8 <= 8:
        return 8
    max_tb = min(cap, max(8, (rows8 // 2) // 8 * 8))   # guarantees >= 2 steps
    # Prefer a tile dividing the padded row count (no batch padding), searching
    # a small window below max_tb; otherwise accept <= max_tb rows of padding.
    t = max_tb
    while t >= max(8, max_tb - 256):
        if rows8 % t == 0:
            return t
        t -= 8
    return max_tb


# --------------------------------------------------------------------------
# Wrapper
# --------------------------------------------------------------------------
def cross_compress(v, e, params, *, tb=None):
    B, dim = v.shape
    assert e.shape == (B, dim)
    out_dtype_v, out_dtype_e = v.dtype, e.dtype
    f32 = jnp.float32

    w_vv = params["weight_vv"].reshape(1, dim).astype(f32)
    w_ev = params["weight_ev"].reshape(1, dim).astype(f32)
    w_ve = params["weight_ve"].reshape(1, dim).astype(f32)
    w_ee = params["weight_ee"].reshape(1, dim).astype(f32)
    b_v = params["bias_v"].reshape(1, dim).astype(f32)
    b_e = params["bias_e"].reshape(1, dim).astype(f32)

    pack = (dim < 128) and (128 % dim == 0)

    if pack:
        # p batch rows packed per 128-lane row (free row-major reshape).
        p = 128 // dim
        L = 128
        B_pad = _round_up(B, p)
        v_in = jnp.pad(v, ((0, B_pad - B), (0, 0))) if B_pad != B else v
        e_in = jnp.pad(e, ((0, B_pad - B), (0, 0))) if B_pad != B else e
        R = B_pad // p
        vw = v_in.reshape(R, L)
        ew = e_in.reshape(R, L)

        # Fold rank-1 weights into the block-diagonal projection, stack pairs
        # column-wise -> two (128, 256) resident MXU operands.
        ri = jax.lax.broadcasted_iota(jnp.int32, (L, L), 0)
        ci = jax.lax.broadcasted_iota(jnp.int32, (L, L), 1)
        blockdiag = ((ri // dim) == (ci // dim)).astype(f32)      # (128, 128)

        def fold(w):  # W[a, c] = w_tiled[a] * blockdiag[a, c]
            return jnp.tile(w, (1, p)).reshape(L, 1) * blockdiag

        W_e = jnp.concatenate([fold(w_vv), fold(w_ve)], axis=1)   # (128, 256)
        W_v = jnp.concatenate([fold(w_ev), fold(w_ee)], axis=1)   # (128, 256)
        bias_slab = jnp.concatenate(
            [jnp.tile(b_v, (1, p)), jnp.tile(b_e, (1, p)), jnp.zeros((6, L), f32)],
            axis=0)                                               # (8, 128)
        resident = (W_e, W_v, bias_slab)
    else:
        # One row per sublane row; pad the lane dim to a multiple of 128 so all
        # loads/stores are unmasked (padded lanes carry zeros, sliced off below).
        L = _round_up(dim, 128)
        pad_l = L - dim
        R = B
        vw = jnp.pad(v, ((0, 0), (0, pad_l))) if pad_l else v
        ew = jnp.pad(e, ((0, 0), (0, pad_l))) if pad_l else e
        rows = [w_vv, w_ev, w_ve, w_ee, b_v, b_e]
        slab = jnp.concatenate(
            [jnp.pad(r, ((0, 0), (0, pad_l))) for r in rows]
            + [jnp.zeros((2, L), f32)], axis=0)                   # (8, L)
        resident = (slab,)

    itemsize = jnp.dtype(v.dtype).itemsize
    if tb is None:
        tb = _pick_tile(R, L, itemsize)
    else:
        tb = max(8, _round_up(int(tb), 8))
    R_pad = _round_up(R, tb)
    if R_pad != R:
        vw = jnp.pad(vw, ((0, R_pad - R), (0, 0)))
        ew = jnp.pad(ew, ((0, R_pad - R), (0, 0)))

    # Explicit scoped-VMEM request: pipelined tiles + resident params + headroom.
    pipeline_bytes = 8 * tb * L * itemsize                        # 4 arrays x 2 buffers
    resident_bytes = 2 * sum(int(a.size) * jnp.dtype(a.dtype).itemsize for a in resident)
    vmem_limit = int(min(_VMEM_CEIL, pipeline_bytes + resident_bytes + _TEMP_HEADROOM))

    row_spec = pl.BlockSpec((tb, L), lambda i: (i, 0))
    if pack:
        kernel = _cc_kernel_packed
        in_specs = [row_spec, row_spec,
                    pl.BlockSpec((L, 2 * L), lambda i: (0, 0)),
                    pl.BlockSpec((L, 2 * L), lambda i: (0, 0)),
                    pl.BlockSpec((8, L), lambda i: (0, 0))]
    else:
        kernel = _cc_kernel_plain
        in_specs = [row_spec, row_spec,
                    pl.BlockSpec((8, L), lambda i: (0, 0))]

    v_out, e_out = pl.pallas_call(
        kernel,
        out_shape=(jax.ShapeDtypeStruct((R_pad, L), out_dtype_v),
                   jax.ShapeDtypeStruct((R_pad, L), out_dtype_e)),
        grid_spec=pltpu.PrefetchScalarGridSpec(
            num_scalar_prefetch=0,
            grid=(R_pad // tb,),
            in_specs=in_specs,
            out_specs=[row_spec, row_spec],
        ),
        compiler_params=pltpu.CompilerParams(
            dimension_semantics=("parallel",),
            vmem_limit_bytes=vmem_limit),
    )(vw, ew, *resident)

    if pack:
        v_out = v_out[:R].reshape(B_pad, dim)[:B]
        e_out = e_out[:R].reshape(B_pad, dim)[:B]
    else:
        v_out = v_out[:B, :dim]
        e_out = e_out[:B, :dim]
    return v_out, e_out


# --------------------------------------------------------------------------
# Reference & init (mirror the PyTorch module)
# --------------------------------------------------------------------------
def _xavier_uniform(key, shape, dtype=jnp.float32):
    fan_out, fan_in = shape
    bound = (6.0 / (fan_in + fan_out)) ** 0.5
    return jax.random.uniform(key, shape, dtype, minval=-bound, maxval=bound)


def init_params(key, dim):
    ks = jax.random.split(key, 6)
    return {
        "weight_vv": _xavier_uniform(ks[0], (dim, 1)),
        "weight_ev": _xavier_uniform(ks[1], (dim, 1)),
        "weight_ve": _xavier_uniform(ks[2], (dim, 1)),
        "weight_ee": _xavier_uniform(ks[3], (dim, 1)),
        "bias_v": _xavier_uniform(ks[4], (1, dim)),
        "bias_e": _xavier_uniform(ks[5], (1, dim)),
    }


def cross_compress_ref(v, e, params):
    B, dim = v.shape
    c = jnp.matmul(v.reshape(B, dim, 1), e.reshape(B, 1, dim))     # (B, dim, dim)
    c_t = jnp.transpose(c, (0, 2, 1))
    c2 = c.reshape(-1, dim)
    c2_t = c_t.reshape(-1, dim)
    v_out = (c2 @ params["weight_vv"] + c2_t @ params["weight_ev"]).reshape(B, dim) + params["bias_v"]
    e_out = (c2 @ params["weight_ve"] + c2_t @ params["weight_ee"]).reshape(B, dim) + params["bias_e"]
    return v_out, e_out


# --------------------------------------------------------------------------
# Test
# --------------------------------------------------------------------------
if __name__ == "__main__":
    key = jax.random.PRNGKey(0)

    def run_case(B, dim, tb=None):
        kv, ke, kp = jax.random.split(jax.random.fold_in(key, B * 131 + dim), 3)
        v = jax.random.normal(kv, (B, dim), dtype=jnp.float32)
        e = jax.random.normal(ke, (B, dim), dtype=jnp.float32)
        params = init_params(kp, dim)

        v_out, e_out = cross_compress(v, e, params, tb=tb)
        jax.block_until_ready((v_out, e_out))

        v_ref, e_ref = cross_compress_ref(v, e, params)
        assert v_out.shape == (B, dim) and e_out.shape == (B, dim), (B, dim)
        assert jnp.allclose(v_out, v_ref, rtol=1e-5, atol=1e-5), ("v", B, dim)
        assert jnp.allclose(e_out, e_ref, rtol=1e-5, atol=1e-5), ("e", B, dim)

    run_case(B=8, dim=32)            # packed path, single step
    run_case(B=10, dim=16)           # packed path, B % p != 0 -> batch padded
    run_case(B=64, dim=32, tb=8)     # packed path, multi-step grid
    run_case(B=16, dim=256)          # plain path, lane-dense dim, 2 grid steps
    run_case(B=6, dim=100)           # plain path, dim padded 100 -> 128

    print("KERNEL_OK")
</pallas_src>

<mosaic_0001>
module attributes {stable_mosaic.version = 11 : i64} {
  func.func @_cc_kernel_packed(%arg0: i32, %arg1: memref<8x128xf32, #tpu.memory_space<vmem>>, %arg2: memref<8x128xf32, #tpu.memory_space<vmem>>, %arg3: memref<128x256xf32, #tpu.memory_space<vmem>>, %arg4: memref<128x256xf32, #tpu.memory_space<vmem>>, %arg5: memref<8x128xf32, #tpu.memory_space<vmem>>, %arg6: memref<8x128xf32, #tpu.memory_space<vmem>>, %arg7: memref<8x128xf32, #tpu.memory_space<vmem>>) attributes {dimension_semantics = [#tpu.dimension_semantics<parallel>], iteration_bounds = array<i64: 1>, scalar_prefetch = 0 : i64, scratch_operands = 0 : i64, tpu.core_type = #tpu.core_type<tc>, window_params = [{transform_indices = @transform_0, window_bounds = array<i64: 8, 128>}, {transform_indices = @transform_1, window_bounds = array<i64: 8, 128>}, {pipeline_mode = #tpu.pipeline_mode<synchronous>, transform_indices = @transform_2, window_bounds = array<i64: 128, 256>}, {pipeline_mode = #tpu.pipeline_mode<synchronous>, transform_indices = @transform_3, window_bounds = array<i64: 128, 256>}, {pipeline_mode = #tpu.pipeline_mode<synchronous>, transform_indices = @transform_4, window_bounds = array<i64: 8, 128>}, {transform_indices = @transform_5, window_bounds = array<i64: 8, 128>}, {transform_indices = @transform_6, window_bounds = array<i64: 8, 128>}]} {
    %c0 = arith.constant 0 : index
    %c0_0 = arith.constant 0 : index
    %0 = vector.load %arg1[%c0, %c0_0] : memref<8x128xf32, #tpu.memory_space<vmem>>, vector<8x128xf32>
    %c0_1 = arith.constant 0 : index
    %c0_2 = arith.constant 0 : index
    %1 = vector.load %arg2[%c0_1, %c0_2] : memref<8x128xf32, #tpu.memory_space<vmem>>, vector<8x128xf32>
    %c0_3 = arith.constant 0 : index
    %c0_4 = arith.constant 0 : index
    %2 = vector.load %arg3[%c0_3, %c0_4] : memref<128x256xf32, #tpu.memory_space<vmem>>, vector<128x256xf32>
    %cst = arith.constant dense<0.000000e+00> : vector<8x256xf32>
    %3 = tpu.matmul %1, %2, %cst {dimension_numbers = #tpu.dot_dimension_numbers<[1], [0], [0], [1], [0, 0, 1, 1], [], []>} : vector<8x128xf32>, vector<128x256xf32>, vector<8x256xf32> -> vector<8x256xf32>
    %c0_5 = arith.constant 0 : index
    %c0_6 = arith.constant 0 : index
    %4 = vector.load %arg4[%c0_5, %c0_6] : memref<128x256xf32, #tpu.memory_space<vmem>>, vector<128x256xf32>
    %cst_7 = arith.constant dense<0.000000e+00> : vector<8x256xf32>
    %5 = tpu.matmul %0, %4, %cst_7 {dimension_numbers = #tpu.dot_dimension_numbers<[1], [0], [0], [1], [0, 0, 1, 1], [], []>} : vector<8x128xf32>, vector<128x256xf32>, vector<8x256xf32> -> vector<8x256xf32>
    %6 = vector.extract_strided_slice %3 {offsets = [0, 0], sizes = [8, 128], strides = [1, 1]} : vector<8x256xf32> to vector<8x128xf32>
    %7 = vector.extract_strided_slice %3 {offsets = [0, 128], sizes = [8, 128], strides = [1, 1]} : vector<8x256xf32> to vector<8x128xf32>
    %8 = vector.extract_strided_slice %5 {offsets = [0, 0], sizes = [8, 128], strides = [1, 1]} : vector<8x256xf32> to vector<8x128xf32>
    %9 = vector.extract_strided_slice %5 {offsets = [0, 128], sizes = [8, 128], strides = [1, 1]} : vector<8x256xf32> to vector<8x128xf32>
    %c0_8 = arith.constant 0 : index
    %c0_9 = arith.constant 0 : index
    %10 = vector.load %arg5[%c0_8, %c0_9] : memref<8x128xf32, #tpu.memory_space<vmem>>, vector<8x128xf32>
    %11 = vector.extract_strided_slice %10 {offsets = [0, 0], sizes = [1, 128], strides = [1, 1]} : vector<8x128xf32> to vector<1x128xf32>
    %12 = vector.extract_strided_slice %10 {offsets = [1, 0], sizes = [1, 128], strides = [1, 1]} : vector<8x128xf32> to vector<1x128xf32>
    %13 = arith.mulf %0, %6 : vector<8x128xf32>
    %14 = arith.mulf %1, %8 : vector<8x128xf32>
    %15 = arith.addf %13, %14 : vector<8x128xf32>
    %16 = vector.broadcast %11 : vector<1x128xf32> to vector<8x128xf32>
    %17 = arith.addf %15, %16 : vector<8x128xf32>
    %c0_10 = arith.constant 0 : index
    %c0_11 = arith.constant 0 : index
    %18 = vector.load %arg6[%c0_10, %c0_11] : memref<8x128xf32, #tpu.memory_space<vmem>>, vector<8x128xf32>
    tpu.vector_store %arg6[%c0_10, %c0_11], %17 {strides = array<i32>} : memref<8x128xf32, #tpu.memory_space<vmem>>, vector<8x128xf32>,
    %19 = arith.mulf %0, %7 : vector<8x128xf32>
    %20 = arith.mulf %1, %9 : vector<8x128xf32>
    %21 = arith.addf %19, %20 : vector<8x128xf32>
    %22 = vector.broadcast %12 : vector<1x128xf32> to vector<8x128xf32>
    %23 = arith.addf %21, %22 : vector<8x128xf32>
    %c0_12 = arith.constant 0 : index
    %c0_13 = arith.constant 0 : index
    %24 = vector.load %arg7[%c0_12, %c0_13] : memref<8x128xf32, #tpu.memory_space<vmem>>, vector<8x128xf32>
    tpu.vector_store %arg7[%c0_12, %c0_13], %23 {strides = array<i32>} : memref<8x128xf32, #tpu.memory_space<vmem>>, vector<8x128xf32>,
    return
  }
  func.func @transform_0(%arg0: i32) -> (i32, i32) {
    %c0_i32 = arith.constant 0 : i32
    %c0_i32_0 = arith.constant 0 : i32
    return %arg0, %c0_i32 : i32, i32
  }
  func.func @transform_1(%arg0: i32) -> (i32, i32) {
    %c0_i32 = arith.constant 0 : i32
    %c0_i32_0 = arith.constant 0 : i32
    return %arg0, %c0_i32 : i32, i32
  }
  func.func @transform_2(%arg0: i32) -> (i32, i32) {
    %c0_i32 = arith.constant 0 : i32
    %c0_i32_0 = arith.constant 0 : i32
    %c0_i32_1 = arith.constant 0 : i32
    return %c0_i32, %c0_i32_0 : i32, i32
  }
  func.func @transform_3(%arg0: i32) -> (i32, i32) {
    %c0_i32 = arith.constant 0 : i32
    %c0_i32_0 = arith.constant 0 : i32
    %c0_i32_1 = arith.constant 0 : i32
    return %c0_i32, %c0_i32_0 : i32, i32
  }
  func.func @transform_4(%arg0: i32) -> (i32, i32) {
    %c0_i32 = arith.constant 0 : i32
    %c0_i32_0 = arith.constant 0 : i32
    %c0_i32_1 = arith.constant 0 : i32
    return %c0_i32, %c0_i32_0 : i32, i32
  }
  func.func @transform_5(%arg0: i32) -> (i32, i32) {
    %c0_i32 = arith.constant 0 : i32
    %c0_i32_0 = arith.constant 0 : i32
    return %arg0, %c0_i32 : i32, i32
  }
  func.func @transform_6(%arg0: i32) -> (i32, i32) {
    %c0_i32 = arith.constant 0 : i32
    %c0_i32_0 = arith.constant 0 : i32
    return %arg0, %c0_i32 : i32, i32
  }
}

</mosaic_0001>

<llo_original>
// kernel: tpu_custom_call.1
$region0: #{tpu_custom_call.1}
  #allocation0 [shape = 'u32[]', space=smem, size = 0x4, offset = 0x4, fixed_abs, tag = 'smem constant byte address 0x4 - core index']
  #allocation1 [shape = 'u32[144,128]{1,0:T(1,128)}', space=vmem, size = 0x12000, scoped, tag = 'internal scratch']
  %s0 = inlined_call_operand.hbm [shape: f32[8,128], index: 0, kind: input, shape index: {}]
  %s1 = inlined_call_operand.hbm [shape: f32[8,128], index: 1, kind: input, shape index: {}]
  %s2 = inlined_call_operand.hbm [shape: f32[128,256], index: 2, kind: input, shape index: {}]
  %s3 = inlined_call_operand.hbm [shape: f32[128,256], index: 3, kind: input, shape index: {}]
  %s4 = inlined_call_operand.vmem [shape: f32[8,128], index: 4, kind: input, shape index: {}]
  %s5 = inlined_call_operand.hbm [shape: f32[8,128], index: 5, kind: output, shape index: {0}]
  %s6 = inlined_call_operand.hbm [shape: f32[8,128], index: 6, kind: output, shape index: {1}]
  %7 = xla_tuple %s5, %s6
  %s8 = sld [smem:[#allocation0]]
  $region54: #{tpu_custom_call.1} parent=0
    _
  %s10 = ssub.s32 1, %s8
  %s11 = scalar_select 0, %s10, %s8
  $region1: #{tpu_custom_call.1} parent=0
    #allocation2 [shape = 'u8[4096]{0}', space=vmem, size = 0x1000, scoped, tag = 'input window, operand 0, single buffered']
    #allocation3 [shape = 's32[1]{0}', space=sflag, size = 0x4, scoped, tag = 'scoped memory for tpu_custom_call.1']
    #allocation4 [shape = 's32[1]{0}', space=sflag, size = 0x4, scoped, tag = 'scoped memory for tpu_custom_call.1']
    #allocation5 [shape = 'u8[4096]{0}', space=vmem, size = 0x1000, scoped, tag = 'input window, operand 1, single buffered']
    #allocation6 [shape = 's32[1]{0}', space=sflag, size = 0x4, scoped, tag = 'scoped memory for tpu_custom_call.1']
    #allocation7 [shape = 'u8[131072]{0}', space=vmem, size = 0x20000, scoped, tag = 'input window, operand 2, single buffered']
    #allocation8 [shape = 'u8[131072]{0}', space=vmem, size = 0x20000, scoped, tag = 'input window, operand 3, single buffered']
    #allocation9 [shape = 's32[1]{0}', space=sflag, size = 0x4, scoped, tag = 'scoped memory for tpu_custom_call.1']
    #allocation10 [shape = 'u8[4096]{0}', space=vmem, size = 0x1000, scoped, tag = 'output window, operand 0, single buffered']
    #allocation11 [shape = 'u8[4096]{0}', space=vmem, size = 0x1000, scoped, tag = 'output window, operand 1, single buffered']
    #allocation12 [shape = 's32[1]{0}', space=sflag, size = 0x4, scoped, tag = 'scoped memory for tpu_custom_call.1']
    %12 = vsyncpa [#allocation3], 0
    %13 = vsyncpa [#allocation6], 0
    %14 = vsyncpa [#allocation9], 0
    %15 = vsyncpa [#allocation4], 0
    %16 = vsyncpa [#allocation12], 0
    // Predicated region
    $region2: #{tpu_custom_call.1} parent=1 // pred_check
      _
    $region3: #{tpu_custom_call.1} parent=1 // pred_check_branch
      %18 = sbr.rel (0) target = $region5
    $region4: #{tpu_custom_call.1} parent=1 // pred_region
      %s20 = ssub.s32 128, 128
      %21 = vsyncadd [#allocation3], %s20
      %s23 = sshll.u32 [#allocation2], 4
      %s24 = int_to_ptr.vmem [resolvable:$true] %s23
      %26 = dma.hbm_to_vmem [thread:$0]  %s0, 128, %s24, [#allocation3]
    $region5: #{tpu_custom_call.1} parent=1 // pred_fallthru
      _
    // Predicated region
    $region6: #{tpu_custom_call.1} parent=1 // pred_check
      _
    $region7: #{tpu_custom_call.1} parent=1 // pred_check_branch
      %28 = sbr.rel (0) target = $region9
    $region8: #{tpu_custom_call.1} parent=1 // pred_region
      %s30 = ssub.s32 128, 128
      %31 = vsyncadd [#allocation6], %s30
      %s33 = sshll.u32 [#allocation5], 4
      %s34 = int_to_ptr.vmem [resolvable:$true] %s33
      %36 = dma.hbm_to_vmem [thread:$0]  %s1, 128, %s34, [#allocation6]
    $region9: #{tpu_custom_call.1} parent=1 // pred_fallthru
      _
    // Predicated region
    $region10: #{tpu_custom_call.1} parent=1 // pred_check
      _
    $region11: #{tpu_custom_call.1} parent=1 // pred_check_branch
      %38 = sbr.rel (0) target = $region13
    $region12: #{tpu_custom_call.1} parent=1 // pred_region
      %s40 = ssub.s32 4096, 4096
      %41 = vsyncadd [#allocation6], %s40
      %s42 = sshll.u32 [#allocation7], 4
      %s43 = int_to_ptr.vmem [resolvable:$true] %s42
      %48 = dma.hbm_to_vmem [thread:$0]  %s2, 4096, %s43, [#allocation6], 256, 256, 16
    $region13: #{tpu_custom_call.1} parent=1 // pred_fallthru
      _
    // Predicated region
    $region14: #{tpu_custom_call.1} parent=1 // pred_check
      _
    $region15: #{tpu_custom_call.1} parent=1 // pred_check_branch
      %50 = sbr.rel (0) target = $region17
    $region16: #{tpu_custom_call.1} parent=1 // pred_region
      %s52 = ssub.s32 4096, 4096
      %53 = vsyncadd [#allocation9], %s52
      %s54 = sshll.u32 [#allocation8], 4
      %s55 = int_to_ptr.vmem [resolvable:$true] %s54
      %60 = dma.hbm_to_vmem [thread:$0]  %s3, 4096, %s55, [#allocation9], 256, 256, 16
    $region17: #{tpu_custom_call.1} parent=1 // pred_fallthru
      _
    // Predicated region
    $region18: #{tpu_custom_call.1} parent=1 // pred_check
      _
    $region19: #{tpu_custom_call.1} parent=1 // pred_check_branch
      %62 = sbr.rel (0) target = $region21
    $region20: #{tpu_custom_call.1} parent=1 // pred_region
      _
    $region21: #{tpu_custom_call.1} parent=1 // pred_fallthru
      _
    // Predicated region
    $region22: #{tpu_custom_call.1} parent=1 // pred_check
      _
    $region23: #{tpu_custom_call.1} parent=1 // pred_check_branch
      %64 = sbr.rel (0) target = $region25
    $region24: #{tpu_custom_call.1} parent=1 // pred_region
      %65 = dma.done [#allocation3], 128
    $region25: #{tpu_custom_call.1} parent=1 // pred_fallthru
      _
    // Predicated region
    $region26: #{tpu_custom_call.1} parent=1 // pred_check
      _
    $region27: #{tpu_custom_call.1} parent=1 // pred_check_branch
      %67 = sbr.rel (0) target = $region29
    $region28: #{tpu_custom_call.1} parent=1 // pred_region
      %68 = dma.done [#allocation6], 128
    $region29: #{tpu_custom_call.1} parent=1 // pred_fallthru
      _
    // Predicated region
    $region30: #{tpu_custom_call.1} parent=1 // pred_check
      _
    $region31: #{tpu_custom_call.1} parent=1 // pred_check_branch
      %70 = sbr.rel (0) target = $region33
    $region32: #{tpu_custom_call.1} parent=1 // pred_region
      %71 = dma.done [#allocation6], 4096
    $region33: #{tpu_custom_call.1} parent=1 // pred_fallthru
      _
    // Predicated region
    $region34: #{tpu_custom_call.1} parent=1 // pred_check
      _
    $region35: #{tpu_custom_call.1} parent=1 // pred_check_branch
      %73 = sbr.rel (0) target = $region37
    $region36: #{tpu_custom_call.1} parent=1 // pred_region
      %74 = dma.done [#allocation9], 4096
    $region37: #{tpu_custom_call.1} parent=1 // pred_fallthru
      _
    %v75 = vld [vmem:[#allocation2] sm:$0xff]
    %v76 = vld [vmem:[#allocation5] sm:$0xff]
    %v77 = vld [vmem:[#allocation7] sm:$0xff]
    %v78 = vld [vmem:[#allocation7 + $0x8] sm:$0xff]
    %v79 = vld [vmem:[#allocation7 + $0x10] sm:$0xff]
    %v80 = vld [vmem:[#allocation7 + $0x18] sm:$0xff]
    %v81 = vld [vmem:[#allocation7 + $0x20] sm:$0xff]
    %v82 = vld [vmem:[#allocation7 + $0x28] sm:$0xff]
    %v83 = vld [vmem:[#allocation7 + $0x30] sm:$0xff]
    %v84 = vld [vmem:[#allocation7 + $0x38] sm:$0xff]
    %v85 = vld [vmem:[#allocation7 + $0x40] sm:$0xff]
    %v86 = vld [vmem:[#allocation7 + $0x48] sm:$0xff]
    %v87 = vld [vmem:[#allocation7 + $0x50] sm:$0xff]
    %v88 = vld [vmem:[#allocation7 + $0x58] sm:$0xff]
    %v89 = vld [vmem:[#allocation7 + $0x60] sm:$0xff]
    %v90 = vld [vmem:[#allocation7 + $0x68] sm:$0xff]
    %v91 = vld [vmem:[#allocation7 + $0x70] sm:$0xff]
    %v92 = vld [vmem:[#allocation7 + $0x78] sm:$0xff]
    %v93 = vld [vmem:[#allocation7 + $0x80] sm:$0xff]
    %v94 = vld [vmem:[#allocation7 + $0x88] sm:$0xff]
    %v95 = vld [vmem:[#allocation7 + $0x90] sm:$0xff]
    %v96 = vld [vmem:[#allocation7 + $0x98] sm:$0xff]
    %v97 = vld [vmem:[#allocation7 + $0xa0] sm:$0xff]
    %v98 = vld [vmem:[#allocation7 + $0xa8] sm:$0xff]
    %v99 = vld [vmem:[#allocation7 + $0xb0] sm:$0xff]
    %v100 = vld [vmem:[#allocation7 + $0xb8] sm:$0xff]
    %v101 = vld [vmem:[#allocation7 + $0xc0] sm:$0xff]
    %v102 = vld [vmem:[#allocation7 + $0xc8] sm:$0xff]
    %v103 = vld [vmem:[#allocation7 + $0xd0] sm:$0xff]
    %v104 = vld [vmem:[#allocation7 + $0xd8] sm:$0xff]
    %v105 = vld [vmem:[#allocation7 + $0xe0] sm:$0xff]
    %v106 = vld [vmem:[#allocation7 + $0xe8] sm:$0xff]
    %v107 = vld [vmem:[#allocation7 + $0xf0] sm:$0xff]
    %v108 = vld [vmem:[#allocation7 + $0xf8] sm:$0xff]
    %109 = vmatprep.subr.mxu0 %v78
    %110 = vmatpush1.msra.mxu0 %v77
    %111 = vmatprep.subr.mxu0 %v80
    %112 = vmatpush1.msra.mxu0 %v79
    %113 = vmatprep.subr.mxu0 %v82
    %114 = vmatpush1.msra.mxu0 %v81
    %115 = vmatprep.subr.mxu0 %v84
    %116 = vmatpush1.msra.mxu0 %v83
    %117 = vmatprep.subr.mxu0 %v86
    %118 = vmatpush1.msra.mxu0 %v85
    %119 = vmatprep.subr.mxu0 %v88
    %120 = vmatpush1.msra.mxu0 %v87
    %121 = vmatprep.subr.mxu0 %v90
    %122 = vmatpush1.msra.mxu0 %v89
    %123 = vmatprep.subr.mxu0 %v92
    %124 = vmatpush1.msra.mxu0 %v91
    %125 = vmatprep.subr.mxu0 %v94
    %126 = vmatpush1.msra.mxu0 %v93
    %127 = vmatprep.subr.mxu0 %v96
    %128 = vmatpush1.msra.mxu0 %v95
    %129 = vmatprep.subr.mxu0 %v98
    %130 = vmatpush1.msra.mxu0 %v97
    %131 = vmatprep.subr.mxu0 %v100
    %132 = vmatpush1.msra.mxu0 %v99
    %133 = vmatprep.subr.mxu0 %v102
    %134 = vmatpush1.msra.mxu0 %v101
    %135 = vmatprep.subr.mxu0 %v104
    %136 = vmatpush1.msra.mxu0 %v103
    %137 = vmatprep.subr.mxu0 %v106
    %138 = vmatpush1.msra.mxu0 %v105
    %139 = vmatprep.subr.mxu0 %v108
    %140 = vmatpush1.msra.mxu0 %v107
    %141 = vmatprep.subr.mxu0 0.0
    %142 = vmatpush1.msra.mxu0 0.0
    %143 = vmatprep.subr.mxu0 0.0
    %144 = vmatpush1.msra.mxu0 0.0
    %145 = vmatprep.subr.mxu0 0.0
    %146 = vmatpush1.msra.mxu0 0.0
    %147 = vmatprep.subr.mxu0 0.0
    %148 = vmatpush1.msra.mxu0 0.0
    %149 = vmatprep.subr.mxu0 0.0
    %150 = vmatpush1.msra.mxu0 0.0
    %151 = vmatprep.subr.mxu0 0.0
    %152 = vmatpush1.msra.mxu0 0.0
    %153 = vmatprep.subr.mxu0 0.0
    %154 = vmatpush1.msra.mxu0 0.0
    %155 = vmatprep.subr.mxu0 0.0
    %156 = vmatpush1.msra.mxu0 0.0
    %157 = vmatprep.subr.mxu0 0.0
    %158 = vmatpush1.msra.mxu0 0.0
    %159 = vmatprep.subr.mxu0 0.0
    %160 = vmatpush1.msra.mxu0 0.0
    %161 = vmatprep.subr.mxu0 0.0
    %162 = vmatpush1.msra.mxu0 0.0
    %163 = vmatprep.subr.mxu0 0.0
    %164 = vmatpush1.msra.mxu0 0.0
    %165 = vmatprep.subr.mxu0 0.0
    %166 = vmatpush1.msra.mxu0 0.0
    %167 = vmatprep.subr.mxu0 0.0
    %168 = vmatpush1.msra.mxu0 0.0
    %169 = vmatprep.subr.mxu0 0.0
    %170 = vmatpush1.msra.mxu0 0.0
    %171 = vmatprep.subr.mxu0 0.0
    %172 = vmatpush1.msra.mxu0 0.0
    %173 = vmatprep.mubr.f32.mxu0 0.0
    %174 = vmatmul.mubr.f32.gmra.mrb[0].mxu0 %v76
    %v175 = vpop.f32.mrb[0].mxu0
    %v176 = vadd.f32 0.0, %v175
    %v177 = vpop.f32.mrb[0].mxu0
    %v178 = vadd.f32 0.0, %v177
    %179 = vdwg.mxu0
    %v180 = vld [vmem:[#allocation8] sm:$0xff]
    %v181 = vld [vmem:[#allocation8 + $0x8] sm:$0xff]
    %v182 = vld [vmem:[#allocation8 + $0x10] sm:$0xff]
    %v183 = vld [vmem:[#allocation8 + $0x18] sm:$0xff]
    %v184 = vld [vmem:[#allocation8 + $0x20] sm:$0xff]
    %v185 = vld [vmem:[#allocation8 + $0x28] sm:$0xff]
    %v186 = vld [vmem:[#allocation8 + $0x30] sm:$0xff]
    %v187 = vld [vmem:[#allocation8 + $0x38] sm:$0xff]
    %v188 = vld [vmem:[#allocation8 + $0x40] sm:$0xff]
    %v189 = vld [vmem:[#allocation8 + $0x48] sm:$0xff]
    %v190 = vld [vmem:[#allocation8 + $0x50] sm:$0xff]
    %v191 = vld [vmem:[#allocation8 + $0x58] sm:$0xff]
    %v192 = vld [vmem:[#allocation8 + $0x60] sm:$0xff]
    %v193 = vld [vmem:[#allocation8 + $0x68] sm:$0xff]
    %v194 = vld [vmem:[#allocation8 + $0x70] sm:$0xff]
    %v195 = vld [vmem:[#allocation8 + $0x78] sm:$0xff]
    %v196 = vld [vmem:[#allocation8 + $0x80] sm:$0xff]
    %v197 = vld [vmem:[#allocation8 + $0x88] sm:$0xff]
    %v198 = vld [vmem:[#allocation8 + $0x90] sm:$0xff]
    %v199 = vld [vmem:[#allocation8 + $0x98] sm:$0xff]
    %v200 = vld [vmem:[#allocation8 + $0xa0] sm:$0xff]
    %v201 = vld [vmem:[#allocation8 + $0xa8] sm:$0xff]
    %v202 = vld [vmem:[#allocation8 + $0xb0] sm:$0xff]
    %v203 = vld [vmem:[#allocation8 + $0xb8] sm:$0xff]
    %v204 = vld [vmem:[#allocation8 + $0xc0] sm:$0xff]
    %v205 = vld [vmem:[#allocation8 + $0xc8] sm:$0xff]
    %v206 = vld [vmem:[#allocation8 + $0xd0] sm:$0xff]
    %v207 = vld [vmem:[#allocation8 + $0xd8] sm:$0xff]
    %v208 = vld [vmem:[#allocation8 + $0xe0] sm:$0xff]
    %v209 = vld [vmem:[#allocation8 + $0xe8] sm:$0xff]
    %v210 = vld [vmem:[#allocation8 + $0xf0] sm:$0xff]
    %v211 = vld [vmem:[#allocation8 + $0xf8] sm:$0xff]
    %212 = vmatprep.subr.mxu0 %v181
    %213 = vmatpush1.msra.mxu0 %v180
    %214 = vmatprep.subr.mxu0 %v183
    %215 = vmatpush1.msra.mxu0 %v182
    %216 = vmatprep.subr.mxu0 %v185
    %217 = vmatpush1.msra.mxu0 %v184
    %218 = vmatprep.subr.mxu0 %v187
    %219 = vmatpush1.msra.mxu0 %v186
    %220 = vmatprep.subr.mxu0 %v189
    %221 = vmatpush1.msra.mxu0 %v188
    %222 = vmatprep.subr.mxu0 %v191
    %223 = vmatpush1.msra.mxu0 %v190
    %224 = vmatprep.subr.mxu0 %v193
    %225 = vmatpush1.msra.mxu0 %v192
    %226 = vmatprep.subr.mxu0 %v195
    %227 = vmatpush1.msra.mxu0 %v194
    %228 = vmatprep.subr.mxu0 %v197
    %229 = vmatpush1.msra.mxu0 %v196
    %230 = vmatprep.subr.mxu0 %v199
    %231 = vmatpush1.msra.mxu0 %v198
    %232 = vmatprep.subr.mxu0 %v201
    %233 = vmatpush1.msra.mxu0 %v200
    %234 = vmatprep.subr.mxu0 %v203
    %235 = vmatpush1.msra.mxu0 %v202
    %236 = vmatprep.subr.mxu0 %v205
    %237 = vmatpush1.msra.mxu0 %v204
    %238 = vmatprep.subr.mxu0 %v207
    %239 = vmatpush1.msra.mxu0 %v206
    %240 = vmatprep.subr.mxu0 %v209
    %241 = vmatpush1.msra.mxu0 %v208
    %242 = vmatprep.subr.mxu0 %v211
    %243 = vmatpush1.msra.mxu0 %v210
    %244 = vmatprep.subr.mxu0 0.0
    %245 = vmatpush1.msra.mxu0 0.0
    %246 = vmatprep.subr.mxu0 0.0
    %247 = vmatpush1.msra.mxu0 0.0
    %248 = vmatprep.subr.mxu0 0.0
    %249 = vmatpush1.msra.mxu0 0.0
    %250 = vmatprep.subr.mxu0 0.0
    %251 = vmatpush1.msra.mxu0 0.0
    %252 = vmatprep.subr.mxu0 0.0
    %253 = vmatpush1.msra.mxu0 0.0
    %254 = vmatprep.subr.mxu0 0.0
    %255 = vmatpush1.msra.mxu0 0.0
    %256 = vmatprep.subr.mxu0 0.0
    %257 = vmatpush1.msra.mxu0 0.0
    %258 = vmatprep.subr.mxu0 0.0
    %259 = vmatpush1.msra.mxu0 0.0
    %260 = vmatprep.subr.mxu0 0.0
    %261 = vmatpush1.msra.mxu0 0.0
    %262 = vmatprep.subr.mxu0 0.0
    %263 = vmatpush1.msra.mxu0 0.0
    %264 = vmatprep.subr.mxu0 0.0
    %265 = vmatpush1.msra.mxu0 0.0
    %266 = vmatprep.subr.mxu0 0.0
    %267 = vmatpush1.msra.mxu0 0.0
    %268 = vmatprep.subr.mxu0 0.0
    %269 = vmatpush1.msra.mxu0 0.0
    %270 = vmatprep.subr.mxu0 0.0
    %271 = vmatpush1.msra.mxu0 0.0
    %272 = vmatprep.subr.mxu0 0.0
    %273 = vmatpush1.msra.mxu0 0.0
    %274 = vmatprep.subr.mxu0 0.0
    %275 = vmatpush1.msra.mxu0 0.0
    %276 = vmatprep.mubr.f32.mxu0 0.0
    %277 = vmatmul.mubr.f32.gmra.mrb[0].mxu0 %v75
    %v278 = vpop.f32.mrb[0].mxu0
    %v279 = vadd.f32 0.0, %v278
    %v280 = vpop.f32.mrb[0].mxu0
    %v281 = vadd.f32 0.0, %v280
    %282 = vdwg.mxu0
    %v283 = vld [vmem:[%s4] sm:$0xff]
    %v284 = vmul.f32 %v75, %v176
    %v285 = vmul.f32 %v76, %v279
    %v286 = vadd.f32 %v284, %v285
    %v287 = vlaneseq
    %v288 = vshrl.u32 %v287, 7
    %v289 = vsub.s32 0, %v288
    %v290 = vrot.slane %v283, %v289
    %v291 = vadd.f32 %v286, %v290
    %292 = vst [vmem:[#allocation10] sm:$0xff] %v291
    %v293 = vmul.f32 %v75, %v178
    %v294 = vmul.f32 %v76, %v281
    %v295 = vadd.f32 %v293, %v294
    %v296 = vlaneseq
    %v297 = vshrl.u32 %v296, 7
    %v298 = vsub.s32 1, %v297
    %v299 = vrot.slane %v283, %v298
    %v300 = vadd.f32 %v295, %v299
    %301 = vst [vmem:[#allocation11] sm:$0xff] %v300
    // Predicated region
    $region38: #{tpu_custom_call.1} parent=1 // pred_check
      _
    $region39: #{tpu_custom_call.1} parent=1 // pred_check_branch
      %303 = sbr.rel (0) target = $region41
    $region40: #{tpu_custom_call.1} parent=1 // pred_region
      %s305 = ssub.s32 128, 128
      %306 = vsyncadd [#allocation4], %s305
      %s308 = sshll.u32 [#allocation10], 4
      %s309 = int_to_ptr.vmem [resolvable:$true] %s308
      %311 = dma.vmem_to_hbm [thread:$0]  %s309, 128, %s5, [#allocation4]
    $region41: #{tpu_custom_call.1} parent=1 // pred_fallthru
      _
    // Predicated region
    $region42: #{tpu_custom_call.1} parent=1 // pred_check
      _
    $region43: #{tpu_custom_call.1} parent=1 // pred_check_branch
      %313 = sbr.rel (0) target = $region45
    $region44: #{tpu_custom_call.1} parent=1 // pred_region
      %s315 = ssub.s32 128, 128
      %316 = vsyncadd [#allocation12], %s315
      %s318 = sshll.u32 [#allocation11], 4
      %s319 = int_to_ptr.vmem [resolvable:$true] %s318
      %321 = dma.vmem_to_hbm [thread:$0]  %s319, 128, %s6, [#allocation12]
    $region45: #{tpu_custom_call.1} parent=1 // pred_fallthru
      _
    // Predicated region
    $region46: #{tpu_custom_call.1} parent=1 // pred_check
      _
    $region47: #{tpu_custom_call.1} parent=1 // pred_check_branch
      %323 = sbr.rel (0) target = $region49
    $region48: #{tpu_custom_call.1} parent=1 // pred_region
      %324 = dma.done [#allocation4], 128
    $region49: #{tpu_custom_call.1} parent=1 // pred_fallthru
      _
    // Predicated region
    $region50: #{tpu_custom_call.1} parent=1 // pred_check
      _
    $region51: #{tpu_custom_call.1} parent=1 // pred_check_branch
      %326 = sbr.rel (0) target = $region53
    $region52: #{tpu_custom_call.1} parent=1 // pred_region
      %327 = dma.done [#allocation12], 128
    $region53: #{tpu_custom_call.1} parent=1 // pred_fallthru
      _
    %328 = vsyncpa [#allocation3], 1
    %329 = vsyncpa [#allocation6], 1
    %330 = vsyncpa [#allocation9], 1
    %331 = vsyncpa [#allocation4], 1
    %332 = vsyncpa [#allocation12], 1

</llo_original>
